<compile_context>
chip_gen: v6e
topology: v6e:2x2x1
jax: 0.10.0
libtpu: 0.0.40
codegen_flags: <defaults>
</compile_context>

<pallas_src>
import jax
import jax.numpy as jnp
from jax.experimental import pallas as pl
from jax.experimental.pallas import tpu as pltpu


# ------------------------------ helpers ------------------------------------

def _round_up(x, m):
    return ((x + m - 1) // m) * m


def _pick_ff_tile(d_ff, target=1024):
    """Largest 128-multiple divisor of d_ff <= target (or d_ff itself)."""
    if d_ff <= target:
        return d_ff
    for t in range(target, 127, -128):
        if d_ff % t == 0:
            return t
    return d_ff


def _make_work_metadata(group_sizes, tm, n_m_tiles, n_experts, n_work):
    """Static-shape work-item metadata for the grouped matmul.

    Work items are (expert, token-tile) pairs, ordered by expert then tile, so
    a tile that straddles a group boundary is visited by consecutive items.
    n_work = n_m_tiles + n_experts - 1 is a static upper bound; excess items
    get an empty row range (contribute nothing).
    """
    ends = jnp.cumsum(group_sizes)                      # [E]
    starts = ends - group_sizes                         # [E]
    tiles_per_group = jnp.where(
        group_sizes > 0, (ends + tm - 1) // tm - starts // tm, 0
    ).astype(jnp.int32)
    work_ends = jnp.cumsum(tiles_per_group)             # [E]
    work_starts = work_ends - tiles_per_group           # [E]
    total_work = work_ends[-1]

    w_idx = jnp.arange(n_work, dtype=jnp.int32)
    grp = jnp.searchsorted(work_ends, w_idx, side="right").astype(jnp.int32)
    valid = w_idx < total_work
    grp = jnp.where(valid, grp, n_experts - 1).astype(jnp.int32)

    tile = starts[grp] // tm + (w_idx - work_starts[grp])
    tile = jnp.where(valid, tile, n_m_tiles - 1).astype(jnp.int32)
    row_start = jnp.where(valid, starts[grp], 0).astype(jnp.int32)
    row_end = jnp.where(valid, ends[grp], 0).astype(jnp.int32)

    prev_tile = jnp.concatenate([jnp.array([-1], jnp.int32), tile[:-1]])
    first_visit = (tile != prev_tile).astype(jnp.int32)
    return tile, grp, row_start, row_end, first_visit


# ----------------------------- Pallas kernels -------------------------------

def router_kernel(x_ref, wrt_ref, br_ref, prob_ref):
    # x: [TMr, d_model] f32, wrt: [d_model, E_pad] (pre-transposed, zero-padded),
    # br: [1, E_pad] (pad lanes = -1e30 so padded experts get ~0 probability).
    logits = jnp.dot(x_ref[...], wrt_ref[...],
                     preferred_element_type=jnp.float32) + br_ref[...]
    m = jnp.max(logits, axis=-1, keepdims=True)
    e = jnp.exp(logits - m)
    prob_ref[...] = e / jnp.sum(e, axis=-1, keepdims=True)


def moe_ffn_kernel(tile_ref, grp_ref, row_start_ref, row_end_ref, first_ref,
                   x_ref, w1_ref, b1_ref, w2_ref, b2_ref, out_ref):
    # grid = (work_item, d_ff_tile).  Output token-tile block is resident while
    # its index repeats; zero it on the first visit, accumulate otherwise.
    w = pl.program_id(0)
    k = pl.program_id(1)

    @pl.when(jnp.logical_and(first_ref[w] == 1, k == 0))
    def _():
        out_ref[...] = jnp.zeros_like(out_ref)

    tm = out_ref.shape[0]
    row0 = tile_ref[w] * tm
    rows = row0 + jax.lax.broadcasted_iota(jnp.int32, (tm, 1), 0)
    in_group = jnp.logical_and(rows >= row_start_ref[w], rows < row_end_ref[w])

    # expert FFN on this (token-tile, d_ff-tile): bf16 operands, f32 accumulate.
    h = jnp.dot(x_ref[...], w1_ref[0], preferred_element_type=jnp.float32)
    h = jnp.maximum(h + b1_ref[0], 0.0)
    y = jnp.dot(h.astype(jnp.bfloat16), w2_ref[0],
                preferred_element_type=jnp.float32)
    # output bias added exactly once (on the first d_ff tile)
    y = y + jnp.where(k == 0, b2_ref[0], jnp.zeros_like(b2_ref[0]))

    out_ref[...] += jnp.where(in_group, y, 0.0)


# ------------------------------ JAX wrapper ---------------------------------

def switch_feed_forward(x, params, *, is_scale_prob=True,
                        capacity_factor=1.0, drop_tokens=False):
    assert not drop_tokens  # TODO(synk): random token dropping not supported
    seq_len, batch_size, d_model = x.shape
    N = seq_len * batch_size
    xf = x.reshape(N, d_model).astype(jnp.float32)

    wr = params["switch_w"]            # [E, d_model]
    br = params["switch_b"]            # [E]
    w1 = params["w1"]                  # [E, d_ff, d_model]
    b1 = params["b1"]                  # [E, d_ff]
    w2 = params["w2"]                  # [E, d_model, d_ff]
    b2 = params["b2"]                  # [E, d_model]
    n_experts = wr.shape[0]
    d_ff = w1.shape[1]

    # ---------------- router (Pallas, token-tiled, lane-dense output) -------
    E_pad = _round_up(n_experts, 128)
    TMr = min(256, _round_up(N, 8))
    N_rpad = _round_up(N, TMr)
    wrt_pad = jnp.zeros((d_model, E_pad), jnp.float32).at[:, :n_experts].set(wr.T)
    br_pad = jnp.full((1, E_pad), -1e30, jnp.float32).at[0, :n_experts].set(br)
    x_r = xf if N_rpad == N else jnp.pad(xf, ((0, N_rpad - N), (0, 0)))

    route_prob_pad = pl.pallas_call(
        router_kernel,
        out_shape=jax.ShapeDtypeStruct((N_rpad, E_pad), jnp.float32),
        grid=(N_rpad // TMr,),
        in_specs=[
            pl.BlockSpec((TMr, d_model), lambda i: (i, 0)),
            pl.BlockSpec((d_model, E_pad), lambda i: (0, 0)),
            pl.BlockSpec((1, E_pad), lambda i: (0, 0)),
        ],
        out_specs=pl.BlockSpec((TMr, E_pad), lambda i: (i, 0)),
        compiler_params=pltpu.CompilerParams(
            dimension_semantics=("parallel",)),
    )(x_r, wrt_pad, br_pad)
    route_prob = route_prob_pad[:N, :n_experts]

    # ---------------- top-1 routing glue (tiny reductions, XLA) -------------
    routes = jnp.argmax(route_prob, axis=-1)
    route_prob_max = jnp.max(route_prob, axis=-1)
    route_prob_sum = jnp.sum(route_prob, axis=0)
    group_sizes = jnp.bincount(routes, length=n_experts).astype(jnp.int32)
    counts = group_sizes.astype(jnp.float32)   # matches torch x.new_tensor

    # ---------------- sort tokens by expert ----------------
    sort_idx = jnp.argsort(routes)
    inv_idx = jnp.argsort(sort_idx)

    TM = min(256, _round_up(N, 8))
    N_pad = _round_up(N, TM)
    n_m_tiles = N_pad // TM
    x_sorted = jnp.take(xf, sort_idx, axis=0)
    if N_pad != N:
        x_sorted = jnp.pad(x_sorted, ((0, N_pad - N), (0, 0)))
    x_sorted = x_sorted.astype(jnp.bfloat16)

    # ---------------- grouped-matmul work metadata (scalar prefetch) --------
    W = n_m_tiles + n_experts - 1
    tile_ids, grp_ids, row_starts, row_ends, first_visit = _make_work_metadata(
        group_sizes, TM, n_m_tiles, n_experts, W)

    # ---------------- expert weights: pre-transposed, bf16 ------------------
    TK = _pick_ff_tile(d_ff)
    KT = d_ff // TK
    w1t = jnp.transpose(w1, (0, 2, 1)).astype(jnp.bfloat16)   # [E, d_model, d_ff]
    w2t = jnp.transpose(w2, (0, 2, 1)).astype(jnp.bfloat16)   # [E, d_ff, d_model]
    b1r = b1.reshape(n_experts, 1, d_ff).astype(jnp.float32)
    b2r = b2.reshape(n_experts, 1, d_model).astype(jnp.float32)

    out_sorted = pl.pallas_call(
        moe_ffn_kernel,
        out_shape=jax.ShapeDtypeStruct((N_pad, d_model), jnp.float32),
        grid_spec=pltpu.PrefetchScalarGridSpec(
            num_scalar_prefetch=5,
            grid=(W, KT),
            in_specs=[
                pl.BlockSpec((TM, d_model),
                             lambda w, k, t, g, rs, re, fv: (t[w], 0)),
                pl.BlockSpec((1, d_model, TK),
                             lambda w, k, t, g, rs, re, fv: (g[w], 0, k)),
                pl.BlockSpec((1, 1, TK),
                             lambda w, k, t, g, rs, re, fv: (g[w], 0, k)),
                pl.BlockSpec((1, TK, d_model),
                             lambda w, k, t, g, rs, re, fv: (g[w], k, 0)),
                pl.BlockSpec((1, 1, d_model),
                             lambda w, k, t, g, rs, re, fv: (g[w], 0, 0)),
            ],
            out_specs=pl.BlockSpec((TM, d_model),
                                   lambda w, k, t, g, rs, re, fv: (t[w], 0)),
        ),
        compiler_params=pltpu.CompilerParams(
            dimension_semantics=("arbitrary", "arbitrary"),
            vmem_limit_bytes=64 * 1024 * 1024),
    )(tile_ids, grp_ids, row_starts, row_ends, first_visit,
      x_sorted, w1t, b1r, w2t, b2r)

    # ---------------- un-sort + routing-prob scaling (fused, XLA) -----------
    out_flat = jnp.take(out_sorted[:N], inv_idx, axis=0)
    if is_scale_prob:
        scale = route_prob_max
    else:
        # forward value of route_prob_max / route_prob_max.detach() is 1.0
        scale = route_prob_max / jax.lax.stop_gradient(route_prob_max)
    final_output = (out_flat * scale[:, None]).reshape(seq_len, batch_size, d_model)

    n_dropped = 0
    return final_output, counts, route_prob_sum, n_dropped, route_prob_max


# ------------------------------ reference -----------------------------------

def reference_forward(x, params, *, is_scale_prob=True):
    seq_len, batch_size, d_model = x.shape
    xf = x.reshape(-1, d_model)
    logits = xf @ params["switch_w"].T + params["switch_b"]
    rp = jax.nn.softmax(logits, axis=-1)
    routes = jnp.argmax(rp, axis=-1)
    rpm = jnp.max(rp, axis=-1)
    n_experts = params["switch_w"].shape[0]
    outs = []
    for e in range(n_experts):
        h = jnp.maximum(xf @ params["w1"][e].T + params["b1"][e], 0.0)
        outs.append(h @ params["w2"][e].T + params["b2"][e])
    outs = jnp.stack(outs)                                   # [E, N, d]
    sel = outs[routes, jnp.arange(xf.shape[0])]              # gather per token
    scale = rpm if is_scale_prob else jnp.ones_like(rpm)
    final = sel * scale[:, None]
    counts = jnp.sum(jax.nn.one_hot(routes, n_experts), axis=0)
    return (final.reshape(seq_len, batch_size, d_model), counts,
            jnp.sum(rp, axis=0), 0, rpm)


# -------------------------------- main ---------------------------------------

if __name__ == "__main__":
    seq_len, batch_size = 8, 2
    d_model, d_ff, n_experts = 128, 256, 4

    key = jax.random.PRNGKey(0)
    ks = jax.random.split(key, 8)
    s = 0.05
    params = {
        "switch_w": s * jax.random.normal(ks[0], (n_experts, d_model), jnp.float32),
        "switch_b": s * jax.random.normal(ks[1], (n_experts,), jnp.float32),
        "w1": s * jax.random.normal(ks[2], (n_experts, d_ff, d_model), jnp.float32),
        "b1": s * jax.random.normal(ks[3], (n_experts, d_ff), jnp.float32),
        "w2": s * jax.random.normal(ks[4], (n_experts, d_model, d_ff), jnp.float32),
        "b2": s * jax.random.normal(ks[5], (n_experts, d_model), jnp.float32),
    }
    x = jax.random.normal(ks[6], (seq_len, batch_size, d_model), jnp.float32)

    out, counts, rp_sum, n_dropped, rp_max = switch_feed_forward(
        x, params, is_scale_prob=True, capacity_factor=1.0, drop_tokens=False)
    jax.block_until_ready(out)

    ref_out, ref_counts, ref_rp_sum, _, ref_rp_max = reference_forward(
        x, params, is_scale_prob=True)

    assert out.shape == (seq_len, batch_size, d_model)
    assert counts.shape == (n_experts,) and rp_sum.shape == (n_experts,)
    assert rp_max.shape == (seq_len * batch_size,)
    assert n_dropped == 0
    # bf16 matmul operands (f32 accumulation) -> slightly looser tolerance.
    assert jnp.allclose(out, ref_out, rtol=2e-2, atol=2e-2)
    assert jnp.allclose(counts, ref_counts)
    assert jnp.allclose(rp_sum, ref_rp_sum, rtol=1e-2, atol=1e-2)
    assert jnp.allclose(rp_max, ref_rp_max, rtol=1e-2, atol=1e-2)

    print("KERNEL_OK")
</pallas_src>

<mosaic_0001>
module attributes {stable_mosaic.version = 11 : i64} {
  func.func @router_kernel(%arg0: i32, %arg1: memref<16x128xf32, #tpu.memory_space<vmem>>, %arg2: memref<128x128xf32, #tpu.memory_space<vmem>>, %arg3: memref<1x128xf32, #tpu.memory_space<vmem>>, %arg4: memref<16x128xf32, #tpu.memory_space<vmem>>) attributes {dimension_semantics = [#tpu.dimension_semantics<parallel>], iteration_bounds = array<i64: 1>, scalar_prefetch = 0 : i64, scratch_operands = 0 : i64, tpu.core_type = #tpu.core_type<tc>, window_params = [{transform_indices = @transform_0, window_bounds = array<i64: 16, 128>}, {pipeline_mode = #tpu.pipeline_mode<synchronous>, transform_indices = @transform_1, window_bounds = array<i64: 128, 128>}, {pipeline_mode = #tpu.pipeline_mode<synchronous>, transform_indices = @transform_2, window_bounds = array<i64: 1, 128>}, {transform_indices = @transform_3, window_bounds = array<i64: 16, 128>}]} {
    %c0 = arith.constant 0 : index
    %c0_0 = arith.constant 0 : index
    %0 = vector.load %arg1[%c0, %c0_0] : memref<16x128xf32, #tpu.memory_space<vmem>>, vector<16x128xf32>
    %c0_1 = arith.constant 0 : index
    %c0_2 = arith.constant 0 : index
    %1 = vector.load %arg2[%c0_1, %c0_2] : memref<128x128xf32, #tpu.memory_space<vmem>>, vector<128x128xf32>
    %cst = arith.constant dense<0.000000e+00> : vector<16x128xf32>
    %2 = tpu.matmul %0, %1, %cst {dimension_numbers = #tpu.dot_dimension_numbers<[1], [0], [0], [1], [0, 0, 1, 1], [], []>} : vector<16x128xf32>, vector<128x128xf32>, vector<16x128xf32> -> vector<16x128xf32>
    %c0_3 = arith.constant 0 : index
    %c0_4 = arith.constant 0 : index
    %3 = vector.load %arg3[%c0_3, %c0_4] : memref<1x128xf32, #tpu.memory_space<vmem>>, vector<1x128xf32>
    %4 = vector.broadcast %3 : vector<1x128xf32> to vector<16x128xf32>
    %5 = arith.addf %2, %4 : vector<16x128xf32>
    %cst_5 = arith.constant dense<0xFF800000> : vector<16xf32>
    %6 = vector.multi_reduction <maximumf>, %5, %cst_5 [1] : vector<16x128xf32> to vector<16xf32>
    %7 = vector.shape_cast %6 : vector<16xf32> to vector<16x1xf32>
    %8 = vector.broadcast %7 : vector<16x1xf32> to vector<16x128xf32>
    %9 = arith.subf %5, %8 : vector<16x128xf32>
    %10 = math.exp %9 : vector<16x128xf32>
    %cst_6 = arith.constant dense<0.000000e+00> : vector<16xf32>
    %11 = vector.multi_reduction <add>, %10, %cst_6 [1] : vector<16x128xf32> to vector<16xf32>
    %12 = vector.shape_cast %11 : vector<16xf32> to vector<16x1xf32>
    %13 = vector.broadcast %12 : vector<16x1xf32> to vector<16x128xf32>
    %14 = arith.divf %10, %13 : vector<16x128xf32>
    %c0_7 = arith.constant 0 : index
    %c0_8 = arith.constant 0 : index
    %15 = vector.load %arg4[%c0_7, %c0_8] : memref<16x128xf32, #tpu.memory_space<vmem>>, vector<16x128xf32>
    tpu.vector_store %arg4[%c0_7, %c0_8], %14 {strides = array<i32>} : memref<16x128xf32, #tpu.memory_space<vmem>>, vector<16x128xf32>,
    return
  }
  func.func @transform_0(%arg0: i32) -> (i32, i32) {
    %c0_i32 = arith.constant 0 : i32
    %c0_i32_0 = arith.constant 0 : i32
    return %arg0, %c0_i32 : i32, i32
  }
  func.func @transform_1(%arg0: i32) -> (i32, i32) {
    %c0_i32 = arith.constant 0 : i32
    %c0_i32_0 = arith.constant 0 : i32
    %c0_i32_1 = arith.constant 0 : i32
    return %c0_i32, %c0_i32_0 : i32, i32
  }
  func.func @transform_2(%arg0: i32) -> (i32, i32) {
    %c0_i32 = arith.constant 0 : i32
    %c0_i32_0 = arith.constant 0 : i32
    %c0_i32_1 = arith.constant 0 : i32
    return %c0_i32, %c0_i32_0 : i32, i32
  }
  func.func @transform_3(%arg0: i32) -> (i32, i32) {
    %c0_i32 = arith.constant 0 : i32
    %c0_i32_0 = arith.constant 0 : i32
    return %arg0, %c0_i32 : i32, i32
  }
}

</mosaic_0001>

<llo_original>
// kernel: tpu_custom_call.1
$region0: #{tpu_custom_call.1}
  #allocation0 [shape = 'u32[]', space=smem, size = 0x4, offset = 0x4, fixed_abs, tag = 'smem constant byte address 0x4 - core index']
  #allocation1 [shape = 'u32[144,128]{1,0:T(1,128)}', space=vmem, size = 0x12000, scoped, tag = 'internal scratch']
  %s0 = inlined_call_operand.hbm [shape: f32[16,128], index: 0, kind: input, shape index: {}]
  %s1 = inlined_call_operand.hbm [shape: f32[128,128], index: 1, kind: input, shape index: {}]
  %s2 = inlined_call_operand.vmem [shape: f32[1,128], index: 2, kind: input, shape index: {}]
  %s3 = inlined_call_operand.hbm [shape: f32[16,128], index: 3, kind: output, shape index: {}]
  %s4 = sld [smem:[#allocation0]]
  $region30: #{tpu_custom_call.1} parent=0
    _
  %s6 = ssub.s32 1, %s4
  %s7 = scalar_select 0, %s6, %s4
  $region1: #{tpu_custom_call.1} parent=0
    #allocation2 [shape = 'u8[8192]{0}', space=vmem, size = 0x2000, scoped, tag = 'input window, operand 0, single buffered']
    #allocation3 [shape = 's32[1]{0}', space=sflag, size = 0x4, scoped, tag = 'scoped memory for tpu_custom_call.1']
    #allocation4 [shape = 's32[1]{0}', space=sflag, size = 0x4, scoped, tag = 'scoped memory for tpu_custom_call.1']
    #allocation5 [shape = 'u8[65536]{0}', space=vmem, size = 0x10000, scoped, tag = 'input window, operand 1, single buffered']
    #allocation6 [shape = 's32[1]{0}', space=sflag, size = 0x4, scoped, tag = 'scoped memory for tpu_custom_call.1']
    #allocation7 [shape = 'u8[8192]{0}', space=vmem, size = 0x2000, scoped, tag = 'output window, operand 0, single buffered']
    %8 = vsyncpa [#allocation3], 0
    %9 = vsyncpa [#allocation6], 0
    %10 = vsyncpa [#allocation4], 0
    // Predicated region
    $region2: #{tpu_custom_call.1} parent=1 // pred_check
      _
    $region3: #{tpu_custom_call.1} parent=1 // pred_check_branch
      %12 = sbr.rel (0) target = $region5
    $region4: #{tpu_custom_call.1} parent=1 // pred_region
      %s14 = ssub.s32 256, 256
      %15 = vsyncadd [#allocation3], %s14
      %s16 = sshll.u32 [#allocation2], 4
      %s17 = int_to_ptr.vmem [resolvable:$true] %s16
      %22 = dma.hbm_to_vmem [thread:$0]  %s0, 256, %s17, [#allocation3], 128, 128, 8
    $region5: #{tpu_custom_call.1} parent=1 // pred_fallthru
      _
    // Predicated region
    $region6: #{tpu_custom_call.1} parent=1 // pred_check
      _
    $region7: #{tpu_custom_call.1} parent=1 // pred_check_branch
      %24 = sbr.rel (0) target = $region9
    $region8: #{tpu_custom_call.1} parent=1 // pred_region
      %s26 = ssub.s32 2048, 2048
      %27 = vsyncadd [#allocation6], %s26
      %s28 = sshll.u32 [#allocation5], 4
      %s29 = int_to_ptr.vmem [resolvable:$true] %s28
      %34 = dma.hbm_to_vmem [thread:$0]  %s1, 2048, %s29, [#allocation6], 128, 128, 8
    $region9: #{tpu_custom_call.1} parent=1 // pred_fallthru
      _
    // Predicated region
    $region10: #{tpu_custom_call.1} parent=1 // pred_check
      _
    $region11: #{tpu_custom_call.1} parent=1 // pred_check_branch
      %36 = sbr.rel (0) target = $region13
    $region12: #{tpu_custom_call.1} parent=1 // pred_region
      _
    $region13: #{tpu_custom_call.1} parent=1 // pred_fallthru
      _
    // Predicated region
    $region14: #{tpu_custom_call.1} parent=1 // pred_check
      _
    $region15: #{tpu_custom_call.1} parent=1 // pred_check_branch
      %38 = sbr.rel (0) target = $region17
    $region16: #{tpu_custom_call.1} parent=1 // pred_region
      %39 = dma.done [#allocation3], 256
    $region17: #{tpu_custom_call.1} parent=1 // pred_fallthru
      _
    // Predicated region
    $region18: #{tpu_custom_call.1} parent=1 // pred_check
      _
    $region19: #{tpu_custom_call.1} parent=1 // pred_check_branch
      %41 = sbr.rel (0) target = $region21
    $region20: #{tpu_custom_call.1} parent=1 // pred_region
      %42 = dma.done [#allocation6], 2048
    $region21: #{tpu_custom_call.1} parent=1 // pred_fallthru
      _
    %v43 = vld [vmem:[#allocation2] sm:$0xff]
    %v44 = vld [vmem:[#allocation2 + $0x8] sm:$0xff]
    %v45 = vld [vmem:[#allocation5] sm:$0xff]
    %v46 = vld [vmem:[#allocation5 + $0x8] sm:$0xff]
    %v47 = vld [vmem:[#allocation5 + $0x10] sm:$0xff]
    %v48 = vld [vmem:[#allocation5 + $0x18] sm:$0xff]
    %v49 = vld [vmem:[#allocation5 + $0x20] sm:$0xff]
    %v50 = vld [vmem:[#allocation5 + $0x28] sm:$0xff]
    %v51 = vld [vmem:[#allocation5 + $0x30] sm:$0xff]
    %v52 = vld [vmem:[#allocation5 + $0x38] sm:$0xff]
    %v53 = vld [vmem:[#allocation5 + $0x40] sm:$0xff]
    %v54 = vld [vmem:[#allocation5 + $0x48] sm:$0xff]
    %v55 = vld [vmem:[#allocation5 + $0x50] sm:$0xff]
    %v56 = vld [vmem:[#allocation5 + $0x58] sm:$0xff]
    %v57 = vld [vmem:[#allocation5 + $0x60] sm:$0xff]
    %v58 = vld [vmem:[#allocation5 + $0x68] sm:$0xff]
    %v59 = vld [vmem:[#allocation5 + $0x70] sm:$0xff]
    %v60 = vld [vmem:[#allocation5 + $0x78] sm:$0xff]
    %v61 = vld [vmem:[%s2] sm:$0x1]
    %v63 = vlaneseq
    %v64 = vshrl.u32 %v63, 7
    %v65 = vsub.s32 0, %v64
    %v66 = vrot.slane %v61, %v65
    %68 = vmatprep.subr.mxu0 0.0
    %69 = vmatpush1.msra.mxu0 %v60
    %70 = vmatprep.subr.mxu0 0.0
    %71 = vmatpush1.msra.mxu0 %v59
    %72 = vmatprep.subr.mxu0 0.0
    %73 = vmatpush1.msra.mxu0 %v58
    %74 = vmatprep.subr.mxu0 0.0
    %75 = vmatpush1.msra.mxu0 %v57
    %76 = vmatprep.subr.mxu0 0.0
    %77 = vmatpush1.msra.mxu0 %v56
    %78 = vmatprep.subr.mxu0 0.0
    %79 = vmatpush1.msra.mxu0 %v55
    %80 = vmatprep.subr.mxu0 0.0
    %81 = vmatpush1.msra.mxu0 %v54
    %82 = vmatprep.subr.mxu0 0.0
    %83 = vmatpush1.msra.mxu0 %v53
    %84 = vmatprep.subr.mxu0 0.0
    %85 = vmatpush1.msra.mxu0 %v52
    %86 = vmatprep.subr.mxu0 0.0
    %87 = vmatpush1.msra.mxu0 %v51
    %88 = vmatprep.subr.mxu0 0.0
    %89 = vmatpush1.msra.mxu0 %v50
    %90 = vmatprep.subr.mxu0 0.0
    %91 = vmatpush1.msra.mxu0 %v49
    %92 = vmatprep.subr.mxu0 0.0
    %93 = vmatpush1.msra.mxu0 %v48
    %94 = vmatprep.subr.mxu0 0.0
    %95 = vmatpush1.msra.mxu0 %v47
    %96 = vmatprep.subr.mxu0 0.0
    %97 = vmatpush1.msra.mxu0 %v46
    %98 = vmatprep.subr.mxu0 0.0
    %99 = vmatpush1.msra.mxu0 %v45
    %100 = vmatprep.subr.mxu0 0.0
    %101 = vmatpush2.msra.mxu0 0.0
    %102 = vmatprep.subr.mxu0 0.0
    %103 = vmatpush2.msra.mxu0 0.0
    %104 = vmatprep.subr.mxu0 0.0
    %105 = vmatpush2.msra.mxu0 0.0
    %106 = vmatprep.subr.mxu0 0.0
    %107 = vmatpush2.msra.mxu0 0.0
    %108 = vmatprep.subr.mxu0 0.0
    %109 = vmatpush2.msra.mxu0 0.0
    %110 = vmatprep.subr.mxu0 0.0
    %111 = vmatpush2.msra.mxu0 0.0
    %112 = vmatprep.subr.mxu0 0.0
    %113 = vmatpush2.msra.mxu0 0.0
    %114 = vmatprep.subr.mxu0 0.0
    %115 = vmatpush2.msra.mxu0 0.0
    %116 = vmatprep.subr.mxu0 0.0
    %117 = vmatpush2.msra.mxu0 0.0
    %118 = vmatprep.subr.mxu0 0.0
    %119 = vmatpush2.msra.mxu0 0.0
    %120 = vmatprep.subr.mxu0 0.0
    %121 = vmatpush2.msra.mxu0 0.0
    %122 = vmatprep.subr.mxu0 0.0
    %123 = vmatpush2.msra.mxu0 0.0
    %124 = vmatprep.subr.mxu0 0.0
    %125 = vmatpush2.msra.mxu0 0.0
    %126 = vmatprep.subr.mxu0 0.0
    %127 = vmatpush2.msra.mxu0 0.0
    %128 = vmatprep.subr.mxu0 0.0
    %129 = vmatpush2.msra.mxu0 0.0
    %130 = vmatprep.subr.mxu0 0.0
    %131 = vmatpush2.msra.mxu0 0.0
    %132 = vmatprep.mubr.f32.mxu0 0.0
    %133 = vmatmul.mubr.f32.gmra.mxu0 %v43
    %v134 = vpop.f32.mrf.mxu0
    %v135 = vadd.f32 %v66, %v134
    %v136 = vpop.f32.mrf.mxu0
    %137 = vmatprep.mubr.f32.mxu0 0.0
    %138 = vmatmul.mubr.f32.gmra.mxu0 %v44
    %v139 = vpop.f32.mrf.mxu0
    %v140 = vadd.f32 %v66, %v139
    %v141 = vpop.f32.mrf.mxu0
    %142 = vdwg.mxu0
    %143 = vmax.xlane.f32.xlu0 %v135
    %v144 = vpop.xlane.xlu0 %143
    %145 = vmax.xlane.f32.xlu0 %v140
    %v146 = vpop.xlane.xlu0 %145
    %v147 = vsub.f32 %v135, %v144
    %v148 = vsub.f32 %v140, %v146
    %v149 = vmul.f32 %v147, 1.442695
    %v150 = vpow.pop %v149
    %v151 = vmul.f32 %v148, 1.442695
    %v152 = vpow.pop %v151
    %153 = vadd.xlane.f32.xlu0 %v150
    %v154 = vpop.xlane.xlu0 %153
    %155 = vadd.xlane.f32.xlu0 %v152
    %v156 = vpop.xlane.xlu0 %155
    %v157 = vrcp.pop %v154
    %v158 = vmul.f32 %v150, %v157
    %v159 = vrcp.pop %v156
    %v160 = vmul.f32 %v152, %v159
    %161 = vst [vmem:[#allocation7] sm:$0xff] %v158
    %162 = vst [vmem:[#allocation7 + $0x8] sm:$0xff] %v160
    // Predicated region
    $region22: #{tpu_custom_call.1} parent=1 // pred_check
      _
    $region23: #{tpu_custom_call.1} parent=1 // pred_check_branch
      %164 = sbr.rel (0) target = $region25
    $region24: #{tpu_custom_call.1} parent=1 // pred_region
      %s166 = ssub.s32 256, 256
      %167 = vsyncadd [#allocation4], %s166
      %s168 = sshll.u32 [#allocation7], 4
      %s169 = int_to_ptr.vmem [resolvable:$true] %s168
      %174 = dma.vmem_to_hbm [thread:$0]  %s169, 256, %s3, [#allocation4], 128, 128, 8
    $region25: #{tpu_custom_call.1} parent=1 // pred_fallthru
      _
    // Predicated region
    $region26: #{tpu_custom_call.1} parent=1 // pred_check
      _
    $region27: #{tpu_custom_call.1} parent=1 // pred_check_branch
      %176 = sbr.rel (0) target = $region29
    $region28: #{tpu_custom_call.1} parent=1 // pred_region
      %177 = dma.done [#allocation4], 256
    $region29: #{tpu_custom_call.1} parent=1 // pred_fallthru
      _
    %178 = vsyncpa [#allocation3], 1
    %179 = vsyncpa [#allocation6], 1
    %180 = vsyncpa [#allocation4], 1

</llo_original>
